<compile_context>
chip_gen: v7x
topology: tpu7x:2x2x1
jax: 0.10.0
libtpu: 0.0.40
codegen_flags: <defaults>
</compile_context>

<pallas_src>
import functools

import jax
import jax.numpy as jnp
from jax.experimental import pallas as pl
from jax.experimental.pallas import tpu as pltpu


def se_block_kernel(x_ref, w1s_ref, shift_ref, w2_ref, b2_ref, o_ref,
                    *, bt, C, inv_hw):
    """One grid step over a (bt*C, HWp) block of channel rows."""
    f32 = jnp.float32
    w1s = w1s_ref[...]          # (hidden, C)   BN scale folded in
    shift = shift_ref[...]      # (hidden, 1)   folded BN shift
    w2 = w2_ref[...]            # (C, hidden)
    b2 = b2_ref[...]            # (C, 1)

    # ---- Squeeze: global average pool, accumulated in f32 ------------------
    if bt == 1:
        pooled = jnp.sum(x_ref[...].astype(f32), axis=-1,
                         keepdims=True) * inv_hw                      # (C, 1)
    else:
        # Build a (C, bt) matrix of per-sample channel means (sample b on lane
        # b) using only broadcast-multiply/adds -- no value reshapes or lane
        # slices, so Mosaic lowering stays trivially legal for any bt.  Each
        # per-sample read is consumed immediately (streaming, short live range).
        lane = jax.lax.broadcasted_iota(jnp.int32, (1, bt), 1)
        pooled = jnp.zeros((C, bt), f32)
        for b in range(bt):                                   # static, tiny
            col = jnp.sum(x_ref[pl.ds(b * C, C), :].astype(f32),
                          axis=-1, keepdims=True) * inv_hw            # (C, 1)
            pooled = pooled + col * (lane == b).astype(f32)

    # ---- Excitation: scaled 1x1 conv -> ReLU -> 1x1 conv -> sigmoid --------
    # Batched across the bt samples on the MXU N axis.
    h = jnp.dot(w1s, pooled, preferred_element_type=f32) + shift      # (hidden, bt)
    h = jnp.maximum(h, 0.0)
    s = jnp.dot(w2, h, preferred_element_type=f32) + b2               # (C, bt)
    gate = jax.nn.sigmoid(s)                                          # (C, bt) f32

    # ---- Scale: re-read x from VMEM (cheap) rather than keeping the pooled
    # read live across the excitation chain; lane-dense full-width stores. ---
    if bt == 1:
        o_ref[...] = x_ref[...] * gate.astype(o_ref.dtype)
    else:
        lane = jax.lax.broadcasted_iota(jnp.int32, (1, bt), 1)
        for b in range(bt):
            g_b = jnp.sum(gate * (lane == b).astype(f32), axis=-1,
                          keepdims=True).astype(o_ref.dtype)          # (C, 1)
            o_ref[pl.ds(b * C, C), :] = x_ref[pl.ds(b * C, C), :] * g_b


def _vmem_capacity_bytes():
    try:
        cap = getattr(pltpu.get_tpu_info(), "vmem_capacity_bytes", None)
        if cap:
            return int(cap)
    except Exception:
        pass
    return 64 << 20   # conservative (v7x per-core VMEM)


def _pick_batch_tile(B, C, HWp, itemsize, budget_bytes):
    """Batch samples per block: biggest block in the 2-8 MiB sweet spot that
    keeps >= min(B, 4) grid steps (read/compute/writeback overlap; both v7x
    TCs busy) and whose double-buffered in+out blocks fit the budget."""
    sublane = {4: 8, 2: 16, 1: 32}.get(int(itemsize), 8)  # dtype-aware tiling
    sample_bytes = C * HWp * itemsize

    def legal(d):
        return B % d == 0 and ((d * C) % sublane == 0 or d == B)

    fits = [d for d in range(1, B + 1)
            if legal(d) and 4 * d * sample_bytes <= budget_bytes]
    if not fits:
        # TODO(synk): two-pass HW-tiled fallback (pool pass + multiply pass)
        # for feature maps too large to keep one (C, HW) sample in VMEM.
        return next(d for d in range(1, B + 1) if legal(d))

    min_steps = min(B, 4)
    preferred = [d for d in fits if B // d >= min_steps] or fits

    def score(d):
        bb = d * sample_bytes
        return ((2 << 20) <= bb <= (8 << 20),   # pipeline sweet spot
                (B // d) % 2 == 0,              # even grid -> both v7x cores
                bb)                             # otherwise: bigger block
    return max(preferred, key=score)


def se_block(x_nchw, w1, bn_gamma, bn_beta, bn_mean, bn_var, w2, b2,
             *, eps=1e-5, vmem_block_budget_bytes=None):
    """SEBlock forward (inference-mode BatchNorm). x_nchw: (B, C, H, W)."""
    B, C, H, W = x_nchw.shape
    hidden = w1.shape[0]        # w1: (hidden, C)  [Conv2d(C, hidden, 1, bias=False)]
    HW = H * W
    itemsize = x_nchw.dtype.itemsize

    # Fold inference-mode BatchNorm into the first 1x1 conv:
    #   BN(W1 @ p) = (gamma/std)*(W1 @ p) + shift = (scale*W1) @ p + shift.
    inv_std = 1.0 / jnp.sqrt(bn_var.astype(jnp.float32) + eps)
    scale = bn_gamma.astype(jnp.float32) * inv_std                        # (hidden,)
    w1_scaled = w1.astype(jnp.float32) * scale[:, None]                   # (hidden, C)
    shift = (bn_beta.astype(jnp.float32)
             - bn_mean.astype(jnp.float32) * scale).reshape(hidden, 1)    # (hidden, 1)
    b2_col = b2.astype(jnp.float32).reshape(C, 1)                         # (C, 1)

    # Free reshape: NCHW -> (B*C, HW) channel rows (no data movement).
    x_flat = x_nchw.reshape(B * C, HW)

    # Lane-dense stores need HW % 128 == 0; pad the spatial axis otherwise.
    # TODO(synk): a two-pass HW-tiled kernel would avoid the extra pad/slice copy.
    HWp = -(-HW // 128) * 128
    if HWp != HW:
        x_flat = jnp.pad(x_flat, ((0, 0), (0, HWp - HW)))

    vmem_cap = _vmem_capacity_bytes()
    if vmem_block_budget_bytes is None:
        # ~1/3 of physical VMEM for the 2x double-buffered (in + out) blocks:
        # ~21 MiB on v7x (64 MiB/TC), capped at 48 MiB on v5e/v6e (128 MiB).
        vmem_block_budget_bytes = min(max(vmem_cap // 3, 16 << 20), 48 << 20)

    bt = _pick_batch_tile(B, C, HWp, itemsize, vmem_block_budget_bytes)
    block_bytes = bt * C * HWp * itemsize
    # Scoped-VMEM limit scales with the real footprint (2 bufs x in+out, plus
    # tiny weights + headroom); never below 32 MiB, never above physical VMEM.
    vmem_limit = int(min(max(4 * block_bytes + (8 << 20), 32 << 20), vmem_cap))

    kernel = functools.partial(se_block_kernel, bt=bt, C=C, inv_hw=1.0 / HW)

    out_flat = pl.pallas_call(
        kernel,
        out_shape=jax.ShapeDtypeStruct((B * C, HWp), x_nchw.dtype),
        grid_spec=pltpu.PrefetchScalarGridSpec(
            num_scalar_prefetch=0,
            grid=(B // bt,),
            in_specs=[
                pl.BlockSpec((bt * C, HWp), lambda i: (i, 0)),   # x channel rows
                pl.BlockSpec((hidden, C), lambda i: (0, 0)),     # scale-folded W1
                pl.BlockSpec((hidden, 1), lambda i: (0, 0)),     # BN shift
                pl.BlockSpec((C, hidden), lambda i: (0, 0)),     # W2
                pl.BlockSpec((C, 1), lambda i: (0, 0)),          # b2
            ],
            out_specs=pl.BlockSpec((bt * C, HWp), lambda i: (i, 0)),
        ),
        compiler_params=pltpu.CompilerParams(
            dimension_semantics=("parallel",),
            vmem_limit_bytes=vmem_limit),
    )(x_flat, w1_scaled, shift, w2.astype(jnp.float32), b2_col)

    if HWp != HW:
        out_flat = out_flat[:, :HW]
    return out_flat.reshape(B, C, H, W)


def se_block_reference(x, w1, bn_gamma, bn_beta, bn_mean, bn_var, w2, b2,
                       *, eps=1e-5):
    """Pure-JAX reference (NCHW), mirrors the PyTorch module in eval mode."""
    pooled = jnp.mean(x, axis=(2, 3))                       # (B, C)
    h = pooled @ w1.T                                       # (B, hidden)
    h = (h - bn_mean) / jnp.sqrt(bn_var + eps) * bn_gamma + bn_beta
    h = jnp.maximum(h, 0.0)
    s = jax.nn.sigmoid(h @ w2.T + b2)                       # (B, C)
    return x * s[:, :, None, None]


if __name__ == "__main__":
    B, C, H, W = 2, 64, 16, 16
    reduction = 16
    hidden = C // reduction

    key = jax.random.PRNGKey(0)
    kx, k1, k2, k3, kg, kb = jax.random.split(key, 6)

    x = jax.random.normal(kx, (B, C, H, W), dtype=jnp.float32)

    # Deterministic synthetic parameters (shapes per nn.Module __init__).
    w1 = jax.random.normal(k1, (hidden, C), dtype=jnp.float32) * 0.1   # Conv2d(C, hidden, 1, bias=False)
    w2 = jax.random.normal(k2, (C, hidden), dtype=jnp.float32) * 0.1   # Conv2d(hidden, C, 1)
    b2 = jax.random.normal(k3, (C,), dtype=jnp.float32) * 0.1
    bn_gamma = 1.0 + 0.1 * jax.random.normal(kg, (hidden,), dtype=jnp.float32)
    bn_beta = 0.1 * jax.random.normal(kb, (hidden,), dtype=jnp.float32)
    bn_mean = jnp.zeros((hidden,), dtype=jnp.float32)
    bn_var = jnp.ones((hidden,), dtype=jnp.float32)

    out = se_block(x, w1, bn_gamma, bn_beta, bn_mean, bn_var, w2, b2)
    out = jax.block_until_ready(out)

    ref = se_block_reference(x, w1, bn_gamma, bn_beta, bn_mean, bn_var, w2, b2)
    assert out.shape == x.shape
    assert jnp.allclose(out, ref, atol=1e-5, rtol=1e-4), "mismatch vs reference"

    print("KERNEL_OK")
</pallas_src>

<mosaic_0001>
module attributes {stable_mosaic.version = 11 : i64} {
  func.func @se_block_kernel(%arg0: i32, %arg1: memref<64x256xf32, #tpu.memory_space<vmem>>, %arg2: memref<4x64xf32, #tpu.memory_space<vmem>>, %arg3: memref<4x1xf32, #tpu.memory_space<vmem>>, %arg4: memref<64x4xf32, #tpu.memory_space<vmem>>, %arg5: memref<64x1xf32, #tpu.memory_space<vmem>>, %arg6: memref<64x256xf32, #tpu.memory_space<vmem>>) attributes {dimension_semantics = [#tpu.dimension_semantics<parallel>], iteration_bounds = array<i64: 2>, scalar_prefetch = 0 : i64, scratch_operands = 0 : i64, tpu.core_type = #tpu.core_type<tc>, window_params = [{transform_indices = @transform_0, window_bounds = array<i64: 64, 256>}, {pipeline_mode = #tpu.pipeline_mode<synchronous>, transform_indices = @transform_1, window_bounds = array<i64: 4, 64>}, {pipeline_mode = #tpu.pipeline_mode<synchronous>, transform_indices = @transform_2, window_bounds = array<i64: 4, 1>}, {pipeline_mode = #tpu.pipeline_mode<synchronous>, transform_indices = @transform_3, window_bounds = array<i64: 64, 4>}, {pipeline_mode = #tpu.pipeline_mode<synchronous>, transform_indices = @transform_4, window_bounds = array<i64: 64, 1>}, {transform_indices = @transform_5, window_bounds = array<i64: 64, 256>}]} {
    %c0 = arith.constant 0 : index
    %c0_0 = arith.constant 0 : index
    %0 = vector.load %arg2[%c0, %c0_0] : memref<4x64xf32, #tpu.memory_space<vmem>>, vector<4x64xf32>
    %c0_1 = arith.constant 0 : index
    %c0_2 = arith.constant 0 : index
    %1 = vector.load %arg3[%c0_1, %c0_2] : memref<4x1xf32, #tpu.memory_space<vmem>>, vector<4x1xf32>
    %c0_3 = arith.constant 0 : index
    %c0_4 = arith.constant 0 : index
    %2 = vector.load %arg4[%c0_3, %c0_4] : memref<64x4xf32, #tpu.memory_space<vmem>>, vector<64x4xf32>
    %c0_5 = arith.constant 0 : index
    %c0_6 = arith.constant 0 : index
    %3 = vector.load %arg5[%c0_5, %c0_6] : memref<64x1xf32, #tpu.memory_space<vmem>>, vector<64x1xf32>
    %c0_7 = arith.constant 0 : index
    %c0_8 = arith.constant 0 : index
    %4 = vector.load %arg1[%c0_7, %c0_8] : memref<64x256xf32, #tpu.memory_space<vmem>>, vector<64x256xf32>
    %cst = arith.constant dense<0.000000e+00> : vector<64xf32>
    %5 = vector.multi_reduction <add>, %4, %cst [1] : vector<64x256xf32> to vector<64xf32>
    %6 = vector.shape_cast %5 : vector<64xf32> to vector<64x1xf32>
    %cst_9 = arith.constant 3.906250e-03 : f32
    %7 = vector.broadcast %cst_9 : f32 to vector<64x1xf32>
    %8 = arith.mulf %6, %7 : vector<64x1xf32>
    %cst_10 = arith.constant dense<0.000000e+00> : vector<4x1xf32>
    %9 = tpu.matmul %0, %8, %cst_10 {dimension_numbers = #tpu.dot_dimension_numbers<[1], [0], [0], [1], [0, 0, 1, 1], [], []>} : vector<4x64xf32>, vector<64x1xf32>, vector<4x1xf32> -> vector<4x1xf32>
    %10 = arith.addf %9, %1 : vector<4x1xf32>
    %cst_11 = arith.constant 0.000000e+00 : f32
    %11 = vector.broadcast %cst_11 : f32 to vector<4x1xf32>
    %12 = arith.maximumf %10, %11 : vector<4x1xf32>
    %cst_12 = arith.constant dense<0.000000e+00> : vector<64x1xf32>
    %13 = tpu.matmul %2, %12, %cst_12 {dimension_numbers = #tpu.dot_dimension_numbers<[1], [0], [0], [1], [0, 0, 1, 1], [], []>} : vector<64x4xf32>, vector<4x1xf32>, vector<64x1xf32> -> vector<64x1xf32>
    %14 = arith.addf %13, %3 : vector<64x1xf32>
    %15 = arith.negf %14 : vector<64x1xf32>
    %16 = math.exp %15 : vector<64x1xf32>
    %cst_13 = arith.constant 1.000000e+00 : f32
    %17 = vector.broadcast %cst_13 : f32 to vector<64x1xf32>
    %18 = arith.addf %17, %16 : vector<64x1xf32>
    %19 = arith.divf %17, %18 : vector<64x1xf32>
    %c0_14 = arith.constant 0 : index
    %c0_15 = arith.constant 0 : index
    %20 = vector.load %arg1[%c0_14, %c0_15] : memref<64x256xf32, #tpu.memory_space<vmem>>, vector<64x256xf32>
    %21 = vector.broadcast %19 : vector<64x1xf32> to vector<64x256xf32>
    %22 = arith.mulf %20, %21 : vector<64x256xf32>
    %c0_16 = arith.constant 0 : index
    %c0_17 = arith.constant 0 : index
    %23 = vector.load %arg6[%c0_16, %c0_17] : memref<64x256xf32, #tpu.memory_space<vmem>>, vector<64x256xf32>
    tpu.vector_store %arg6[%c0_16, %c0_17], %22 {strides = array<i32>} : memref<64x256xf32, #tpu.memory_space<vmem>>, vector<64x256xf32>,
    return
  }
  func.func @transform_0(%arg0: i32) -> (i32, i32) {
    %c0_i32 = arith.constant 0 : i32
    %c0_i32_0 = arith.constant 0 : i32
    return %arg0, %c0_i32 : i32, i32
  }
  func.func @transform_1(%arg0: i32) -> (i32, i32) {
    %c0_i32 = arith.constant 0 : i32
    %c0_i32_0 = arith.constant 0 : i32
    %c0_i32_1 = arith.constant 0 : i32
    return %c0_i32, %c0_i32_0 : i32, i32
  }
  func.func @transform_2(%arg0: i32) -> (i32, i32) {
    %c0_i32 = arith.constant 0 : i32
    %c0_i32_0 = arith.constant 0 : i32
    %c0_i32_1 = arith.constant 0 : i32
    return %c0_i32, %c0_i32_0 : i32, i32
  }
  func.func @transform_3(%arg0: i32) -> (i32, i32) {
    %c0_i32 = arith.constant 0 : i32
    %c0_i32_0 = arith.constant 0 : i32
    %c0_i32_1 = arith.constant 0 : i32
    return %c0_i32, %c0_i32_0 : i32, i32
  }
  func.func @transform_4(%arg0: i32) -> (i32, i32) {
    %c0_i32 = arith.constant 0 : i32
    %c0_i32_0 = arith.constant 0 : i32
    %c0_i32_1 = arith.constant 0 : i32
    return %c0_i32, %c0_i32_0 : i32, i32
  }
  func.func @transform_5(%arg0: i32) -> (i32, i32) {
    %c0_i32 = arith.constant 0 : i32
    %c0_i32_0 = arith.constant 0 : i32
    return %arg0, %c0_i32 : i32, i32
  }
}

</mosaic_0001>

<llo_original>
// kernel: tpu_custom_call.1
$region0: #{tpu_custom_call.1}
  #allocation0 [shape = 'u32[]', space=smem, size = 0x4, offset = 0x4, fixed_abs, tag = 'smem constant byte address 0x4 - core index']
  #allocation1 [shape = 'u32[144,128]{1,0:T(1,128)}', space=vmem, size = 0x12000, scoped, tag = 'internal scratch']
  %s0 = inlined_call_operand.hbm [shape: f32[128,256], index: 0, kind: input, shape index: {}]
  %s1 = inlined_call_operand.vmem [shape: f32[4,64], index: 1, kind: input, shape index: {}]
  %s2 = inlined_call_operand.vmem [shape: f32[4,1], index: 2, kind: input, shape index: {}]
  %s3 = inlined_call_operand.vmem [shape: f32[64,4], index: 3, kind: input, shape index: {}]
  %s4 = inlined_call_operand.vmem [shape: f32[64,1], index: 4, kind: input, shape index: {}]
  %s5 = inlined_call_operand.hbm [shape: f32[128,256], index: 5, kind: output, shape index: {}]
  %s6 = sld [smem:[#allocation0]]
  $region57: #{tpu_custom_call.1} parent=0
    _
  %s8 = ssub.s32 1, %s6
  %s9 = scalar_select 0, %s8, %s6
  $region1: #{tpu_custom_call.1} parent=0
    #allocation2 [shape = 'u8[131072]{0}', space=vmem, size = 0x20000, scoped, tag = 'input window, operand 0']
    #allocation3 [shape = 's32[2]{0}', space=sflag, size = 0x8, scoped, tag = 'scoped memory for tpu_custom_call.1']
    #allocation4 [shape = 's32[2]{0}', space=sflag, size = 0x8, scoped, tag = 'scoped memory for tpu_custom_call.1']
    #allocation5 [shape = 'u8[131072]{0}', space=vmem, size = 0x20000, scoped, tag = 'output window, operand 0']
    %10 = vsyncpa [#allocation3], 0
    %s11 = scalar_lea.sflag [#allocation3], 1
    %12 = vsyncpa %s11, 0
    %13 = vsyncpa [#allocation4], 0
    %s14 = scalar_lea.sflag [#allocation4], 1
    %15 = vsyncpa %s14, 0
    loop: start=0, step=1, limit=4
    $region2: #{tpu_custom_call.1} parent=1 // loop_pre_header
      _
    $region3: #{tpu_custom_call.1} parent=1 // loop_header
      %s17 = sphi 0, %s21
      %p18 = scmp.ge.s32.totalorder %s17, 4
      %s27 = sphi 0, %s29
      %s30 = sphi 0, %s27
      %s31 = sphi 0, %s30
      %s47 = sphi 0, %s31
      %s51 = sphi 0, %s51
      %s53 = sphi 0, %s51
      %s54 = sphi 0, %s53
      %s68 = sphi 0, %s54
      %s72 = sphi 0, %s72
      %s74 = sphi 0, %s72
      %s75 = sphi 0, %s74
      %s89 = sphi 0, %s75
      %s93 = sphi 0, %s93
      %s95 = sphi 0, %s93
      %s96 = sphi 0, %s95
      %s110 = sphi 0, %s96
      %s114 = sphi 0, %s114
      %s116 = sphi 0, %s114
      %s117 = sphi 0, %s116
      %s131 = sphi 0, %s117
      %s137 = sphi 0, %s139
      %s140 = sphi 0, %s137
      %s141 = sphi 0, %s140
      %s157 = sphi 0, %s141
    $region4: #{tpu_custom_call.1} parent=1 // loop_header_branch
      %20 = sbr.rel (%p18) target = $region8
    $region5: #{tpu_custom_call.1} parent=1 // loop_body
      %s22 = ssub.s32 %s17, 1
      %s23 = ssub.s32 %s17, 2
      %s24 = sadd.s32 %s17, 1
      %s25 = ssub.s32 %s17, %s24
      %p26 = scmp.eq.s32.totalorder %s25, 0
      %s28 = sadd.s32 %s27, 1
      %s29 = scalar_select %p26, %s27, %s28
      %p32 = pneg %p26
      %p33 = scmp.eq.s32.totalorder %s17, 1
      %p34 = por %p32, %p33
      %p35 = scmp.ne.s32.totalorder %s27, %s30
      %p36 = scmp.eq.s32.totalorder %s17, 0
      %p37 = por %p35, %p36
      %p38 = scmp.ne.s32.totalorder %s27, %s30
      %p39 = scmp.eq.s32.totalorder %s22, 1
      %p40 = por %p38, %p39
      %p41 = scmp.ne.s32.totalorder %s30, %s31
      %p42 = scmp.eq.s32.totalorder %s22, 0
      %p43 = por %p41, %p42
      %p44 = scmp.ne.s32.totalorder %s30, %s31
      %p45 = scmp.eq.s32.totalorder %s23, 1
      %p46 = por %p44, %p45
      %p48 = scmp.ne.s32.totalorder %s31, %s47
      %p49 = scmp.eq.s32.totalorder %s23, 0
      %p50 = por %p48, %p49
      %s52 = sadd.s32 %s51, 1
      %p55 = scmp.eq.s32.totalorder %s17, 1
      %p56 = scmp.ne.s32.totalorder %s51, %s53
      %p57 = scmp.eq.s32.totalorder %s17, 0
      %p58 = por %p56, %p57
      %p59 = scmp.ne.s32.totalorder %s51, %s53
      %p60 = scmp.eq.s32.totalorder %s22, 1
      %p61 = por %p59, %p60
      %p62 = scmp.ne.s32.totalorder %s53, %s54
      %p63 = scmp.eq.s32.totalorder %s22, 0
      %p64 = por %p62, %p63
      %p65 = scmp.ne.s32.totalorder %s53, %s54
      %p66 = scmp.eq.s32.totalorder %s23, 1
      %p67 = por %p65, %p66
      %p69 = scmp.ne.s32.totalorder %s54, %s68
      %p70 = scmp.eq.s32.totalorder %s23, 0
      %p71 = por %p69, %p70
      %s73 = sadd.s32 %s72, 1
      %p76 = scmp.eq.s32.totalorder %s17, 1
      %p77 = scmp.ne.s32.totalorder %s72, %s74
      %p78 = scmp.eq.s32.totalorder %s17, 0
      %p79 = por %p77, %p78
      %p80 = scmp.ne.s32.totalorder %s72, %s74
      %p81 = scmp.eq.s32.totalorder %s22, 1
      %p82 = por %p80, %p81
      %p83 = scmp.ne.s32.totalorder %s74, %s75
      %p84 = scmp.eq.s32.totalorder %s22, 0
      %p85 = por %p83, %p84
      %p86 = scmp.ne.s32.totalorder %s74, %s75
      %p87 = scmp.eq.s32.totalorder %s23, 1
      %p88 = por %p86, %p87
      %p90 = scmp.ne.s32.totalorder %s75, %s89
      %p91 = scmp.eq.s32.totalorder %s23, 0
      %p92 = por %p90, %p91
      %s94 = sadd.s32 %s93, 1
      %p97 = scmp.eq.s32.totalorder %s17, 1
      %p98 = scmp.ne.s32.totalorder %s93, %s95
      %p99 = scmp.eq.s32.totalorder %s17, 0
      %p100 = por %p98, %p99
      %p101 = scmp.ne.s32.totalorder %s93, %s95
      %p102 = scmp.eq.s32.totalorder %s22, 1
      %p103 = por %p101, %p102
      %p104 = scmp.ne.s32.totalorder %s95, %s96
      %p105 = scmp.eq.s32.totalorder %s22, 0
      %p106 = por %p104, %p105
      %p107 = scmp.ne.s32.totalorder %s95, %s96
      %p108 = scmp.eq.s32.totalorder %s23, 1
      %p109 = por %p107, %p108
      %p111 = scmp.ne.s32.totalorder %s96, %s110
      %p112 = scmp.eq.s32.totalorder %s23, 0
      %p113 = por %p111, %p112
      %s115 = sadd.s32 %s114, 1
      %p118 = scmp.eq.s32.totalorder %s17, 1
      %p119 = scmp.ne.s32.totalorder %s114, %s116
      %p120 = scmp.eq.s32.totalorder %s17, 0
      %p121 = por %p119, %p120
      %p122 = scmp.ne.s32.totalorder %s114, %s116
      %p123 = scmp.eq.s32.totalorder %s22, 1
      %p124 = por %p122, %p123
      %p125 = scmp.ne.s32.totalorder %s116, %s117
      %p126 = scmp.eq.s32.totalorder %s22, 0
      %p127 = por %p125, %p126
      %p128 = scmp.ne.s32.totalorder %s116, %s117
      %p129 = scmp.eq.s32.totalorder %s23, 1
      %p130 = por %p128, %p129
      %p132 = scmp.ne.s32.totalorder %s117, %s131
      %p133 = scmp.eq.s32.totalorder %s23, 0
      %p134 = por %p132, %p133
      %s135 = ssub.s32 %s17, %s24
      %p136 = scmp.eq.s32.totalorder %s135, 0
      %s138 = sadd.s32 %s137, 1
      %s139 = scalar_select %p136, %s137, %s138
      %p142 = pneg %p136
      %p143 = scmp.eq.s32.totalorder %s17, 1
      %p144 = por %p142, %p143
      %p145 = scmp.ne.s32.totalorder %s137, %s140
      %p146 = scmp.eq.s32.totalorder %s17, 0
      %p147 = por %p145, %p146
      %p148 = scmp.ne.s32.totalorder %s137, %s140
      %p149 = scmp.eq.s32.totalorder %s22, 1
      %p150 = por %p148, %p149
      %p151 = scmp.ne.s32.totalorder %s140, %s141
      %p152 = scmp.eq.s32.totalorder %s22, 0
      %p153 = por %p151, %p152
      %p154 = scmp.ne.s32.totalorder %s140, %s141
      %p155 = scmp.eq.s32.totalorder %s23, 1
      %p156 = por %p154, %p155
      %p158 = scmp.ne.s32.totalorder %s141, %s157
      %p159 = scmp.eq.s32.totalorder %s23, 0
      %p160 = por %p158, %p159
      %p161 = scmp.le.s32.totalorder 1, %s17
      %p162 = scmp.lt.s32.totalorder %s17, 3
      %p163 = pnand %p161, %p162
      %p164 = pneg %p163
      // Predicated region
      $region9: #{tpu_custom_call.1} parent=5 // pred_check
        _
      $region10: #{tpu_custom_call.1} parent=5 // pred_check_branch
        %166 = sbr.rel (%p163) target = $region12
      $region11: #{tpu_custom_call.1} parent=5 // pred_region
        %s167 = ssub.s32 %s17, 1
        // Predicated region
        $region13: #{tpu_custom_call.1} parent=11 // pred_check
          %p168 = pneg %p64
        $region14: #{tpu_custom_call.1} parent=11 // pred_check_branch
          %170 = sbr.rel (%p168) target = $region16
        $region15: #{tpu_custom_call.1} parent=11 // pred_region
          _
        $region16: #{tpu_custom_call.1} parent=11 // pred_fallthru
          _
        // Predicated region
        $region17: #{tpu_custom_call.1} parent=11 // pred_check
          %p171 = pneg %p85
        $region18: #{tpu_custom_call.1} parent=11 // pred_check_branch
          %173 = sbr.rel (%p171) target = $region20
        $region19: #{tpu_custom_call.1} parent=11 // pred_region
          _
        $region20: #{tpu_custom_call.1} parent=11 // pred_fallthru
          _
        // Predicated region
        $region21: #{tpu_custom_call.1} parent=11 // pred_check
          %p174 = pneg %p106
        $region22: #{tpu_custom_call.1} parent=11 // pred_check_branch
          %176 = sbr.rel (%p174) target = $region24
        $region23: #{tpu_custom_call.1} parent=11 // pred_region
          _
        $region24: #{tpu_custom_call.1} parent=11 // pred_fallthru
          _
        // Predicated region
        $region25: #{tpu_custom_call.1} parent=11 // pred_check
          %p177 = pneg %p127
        $region26: #{tpu_custom_call.1} parent=11 // pred_check_branch
          %179 = sbr.rel (%p177) target = $region28
        $region27: #{tpu_custom_call.1} parent=11 // pred_region
          _
        $region28: #{tpu_custom_call.1} parent=11 // pred_fallthru
          _
      $region12: #{tpu_custom_call.1} parent=5 // pred_fallthru
        _
      %p180 = scmp.lt.s32.totalorder %s17, 2
      // Predicated region
      $region29: #{tpu_custom_call.1} parent=5 // pred_check
        %p181 = pneg %p180
      $region30: #{tpu_custom_call.1} parent=5 // pred_check_branch
        %183 = sbr.rel (%p181) target = $region32
      $region31: #{tpu_custom_call.1} parent=5 // pred_region
        // Predicated region
        $region33: #{tpu_custom_call.1} parent=31 // pred_check
          %p184 = pneg %p37
        $region34: #{tpu_custom_call.1} parent=31 // pred_check_branch
          %186 = sbr.rel (%p184) target = $region36
        $region35: #{tpu_custom_call.1} parent=31 // pred_region
          %s187 = sand.u32 %s27, 1
          %s188 = scalar_lea.sflag [#allocation3], %s187
          %s189 = sand.u32 %s27, 1
          %s190 = smul.addr %s189, 128
          %s191 = scalar_lea.vmem [#allocation2], %s190
          %s192 = smul.u32 8, %s17
          %s194 = ssub.s32 2048, 2048
          %195 = vsyncadd %s188, %s194
          %s196 = smul.addr %s192, 2
          %s197 = smul.addr %s196, 128
          %s198 = scalar_lea.hbm %s0, %s197
          %s199 = sshll.u32 %s191, 4
          %s200 = int_to_ptr.vmem [resolvable:$true] %s199
          %205 = dma.hbm_to_vmem [thread:$0]  %s198, 2048, %s200, %s188, 256, 256, 16
        $region36: #{tpu_custom_call.1} parent=31 // pred_fallthru
          _
      $region32: #{tpu_custom_call.1} parent=5 // pred_fallthru
        _
      %p206 = scmp.le.s32.totalorder 1, %s17
      %p207 = scmp.lt.s32.totalorder %s17, 3
      %p208 = pnand %p206, %p207
      %p209 = pneg %p208
      // Predicated region
      $region37: #{tpu_custom_call.1} parent=5 // pred_check
        _
      $region38: #{tpu_custom_call.1} parent=5 // pred_check_branch
        %211 = sbr.rel (%p208) target = $region40
      $region39: #{tpu_custom_call.1} parent=5 // pred_region
        %s212 = ssub.s32 %s17, 1
        %s213 = sand.u32 %s30, 1
        %s214 = scalar_lea.sflag [#allocation3], %s213
        %s215 = sand.u32 %s30, 1
        %s216 = smul.addr %s215, 128
        %s217 = scalar_lea.vmem [#allocation2], %s216
        // Predicated region
        $region41: #{tpu_custom_call.1} parent=39 // pred_check
          %p218 = pneg %p43
        $region42: #{tpu_custom_call.1} parent=39 // pred_check_branch
          %220 = sbr.rel (%p218) target = $region44
        $region43: #{tpu_custom_call.1} parent=39 // pred_region
          %221 = dma.done %s214, 2048
        $region44: #{tpu_custom_call.1} parent=39 // pred_fallthru
          _
        %s222 = sand.u32 %s30, 1
        %s223 = scalar_lea.sflag [#allocation3], %s222
        %s224 = sand.u32 %s30, 1
        %s225 = smul.addr %s224, 128
        %s226 = scalar_lea.vmem [#allocation2], %s225
        %p227 = pneg %p43
        %p228 = pneg %p40
        %p229 = pneg %p64
        %p230 = pneg %p61
        %p231 = pneg %p85
        %p232 = pneg %p82
        %p233 = pneg %p106
        %p234 = pneg %p103
        %p235 = pneg %p127
        %p236 = pneg %p124
        %p237 = pneg %p153
        %p238 = pneg %p150
        %s239 = sand.u32 %s140, 1
        %s240 = scalar_lea.sflag [#allocation4], %s239
        %s241 = sand.u32 %s140, 1
        %s242 = smul.addr %s241, 128
        %s243 = scalar_lea.vmem [#allocation5], %s242
        %s244 = smul.u32 8, %s22
        %s245 = smul.u32 8, %s22
        %v246 = vld [vmem:[%s1] sm:$0xf]
        %v247 = vld [vmem:[%s2] sm:$0xf]
        %v248 = vld [vmem:[%s3] sm:$0xff]
        %v249 = vld [vmem:[%s3 + $0x8] sm:$0xff]
        %v250 = vld [vmem:[%s3 + $0x10] sm:$0xff]
        %v251 = vld [vmem:[%s3 + $0x18] sm:$0xff]
        %v252 = vld [vmem:[%s3 + $0x20] sm:$0xff]
        %v253 = vld [vmem:[%s3 + $0x28] sm:$0xff]
        %v254 = vld [vmem:[%s3 + $0x30] sm:$0xff]
        %v255 = vld [vmem:[%s3 + $0x38] sm:$0xff]
        %v256 = vld [vmem:[%s4] sm:$0xff]
        %v257 = vld [vmem:[%s4 + $0x8] sm:$0xff]
        %v258 = vld [vmem:[%s4 + $0x10] sm:$0xff]
        %v259 = vld [vmem:[%s4 + $0x18] sm:$0xff]
        %v260 = vld [vmem:[%s4 + $0x20] sm:$0xff]
        %v261 = vld [vmem:[%s4 + $0x28] sm:$0xff]
        %v262 = vld [vmem:[%s4 + $0x30] sm:$0xff]
        %v263 = vld [vmem:[%s4 + $0x38] sm:$0xff]
        %v264 = vld [vmem:[%s217] sm:$0xff]
        %v265 = vld [vmem:[%s217 + $0x8] sm:$0xff]
        %v266 = vld [vmem:[%s217 + $0x10] sm:$0xff]
        %v267 = vld [vmem:[%s217 + $0x18] sm:$0xff]
        %v268 = vld [vmem:[%s217 + $0x20] sm:$0xff]
        %v269 = vld [vmem:[%s217 + $0x28] sm:$0xff]
        %v270 = vld [vmem:[%s217 + $0x30] sm:$0xff]
        %v271 = vld [vmem:[%s217 + $0x38] sm:$0xff]
        %v272 = vld [vmem:[%s217 + $0x40] sm:$0xff]
        %v273 = vld [vmem:[%s217 + $0x48] sm:$0xff]
        %v274 = vld [vmem:[%s217 + $0x50] sm:$0xff]
        %v275 = vld [vmem:[%s217 + $0x58] sm:$0xff]
        %v276 = vld [vmem:[%s217 + $0x60] sm:$0xff]
        %v277 = vld [vmem:[%s217 + $0x68] sm:$0xff]
        %v278 = vld [vmem:[%s217 + $0x70] sm:$0xff]
        %v279 = vld [vmem:[%s217 + $0x78] sm:$0xff]
        %v280 = vadd.f32 %v264, %v265
        %281 = vadd.xlane.f32.xlu0 %v280
        %v282 = vpop.xlane.xlu0 %281
        %v283 = vadd.f32 %v266, %v267
        %284 = vadd.xlane.f32.xlu0 %v283
        %v285 = vpop.xlane.xlu0 %284
        %v286 = vadd.f32 %v268, %v269
        %287 = vadd.xlane.f32.xlu0 %v286
        %v288 = vpop.xlane.xlu0 %287
        %v289 = vadd.f32 %v270, %v271
        %290 = vadd.xlane.f32.xlu0 %v289
        %v291 = vpop.xlane.xlu0 %290
        %v292 = vadd.f32 %v272, %v273
        %293 = vadd.xlane.f32.xlu0 %v292
        %v294 = vpop.xlane.xlu0 %293
        %v295 = vadd.f32 %v274, %v275
        %296 = vadd.xlane.f32.xlu0 %v295
        %v297 = vpop.xlane.xlu0 %296
        %v298 = vadd.f32 %v276, %v277
        %299 = vadd.xlane.f32.xlu0 %v298
        %v300 = vpop.xlane.xlu0 %299
        %v301 = vadd.f32 %v278, %v279
        %302 = vadd.xlane.f32.xlu0 %v301
        %v303 = vpop.xlane.xlu0 %302
        %v304 = vmul.f32 %v282, 0.00390625
        %v305 = vmul.f32 %v285, 0.00390625
        %v306 = vmul.f32 %v288, 0.00390625
        %v307 = vmul.f32 %v291, 0.00390625
        %v308 = vmul.f32 %v294, 0.00390625
        %v309 = vmul.f32 %v297, 0.00390625
        %v310 = vmul.f32 %v300, 0.00390625
        %v311 = vmul.f32 %v303, 0.00390625
        %vm312 = vcmask 523264
        %v314 = vsel %vm312, %v246, 0
        %316 = vmatprep.subr.mxu0 0.0
        %317 = vmatpush1.msra.mxu0 %v304
        %318 = vmatprep.subr.mxu0 0.0
        %319 = vmatpush1.msra.mxu0 %v305
        %320 = vmatprep.subr.mxu0 0.0
        %321 = vmatpush1.msra.mxu0 %v306
        %322 = vmatprep.subr.mxu0 0.0
        %323 = vmatpush1.msra.mxu0 %v307
        %324 = vmatprep.subr.mxu0 0.0
        %325 = vmatpush1.msra.mxu0 %v308
        %326 = vmatprep.subr.mxu0 0.0
        %327 = vmatpush1.msra.mxu0 %v309
        %328 = vmatprep.subr.mxu0 0.0
        %329 = vmatpush1.msra.mxu0 %v310
        %330 = vmatprep.subr.mxu0 0.0
        %331 = vmatpush1.msra.mxu0 %v311
        %332 = vmatprep.subr.mxu0 0.0
        %333 = vmatpush1.msra.mxu0 0.0
        %334 = vmatprep.subr.mxu0 0.0
        %335 = vmatpush1.msra.mxu0 0.0
        %336 = vmatprep.subr.mxu0 0.0
        %337 = vmatpush1.msra.mxu0 0.0
        %338 = vmatprep.subr.mxu0 0.0
        %339 = vmatpush1.msra.mxu0 0.0
        %340 = vmatprep.subr.mxu0 0.0
        %341 = vmatpush1.msra.mxu0 0.0
        %342 = vmatprep.subr.mxu0 0.0
        %343 = vmatpush1.msra.mxu0 0.0
        %344 = vmatprep.subr.mxu0 0.0
        %345 = vmatpush1.msra.mxu0 0.0
        %346 = vmatprep.subr.mxu0 0.0
        %347 = vmatpush1.msra.mxu0 0.0
        %348 = vmatprep.subr.mxu0 0.0
        %349 = vmatpush1.msra.mxu0 0.0
        %350 = vmatprep.subr.mxu0 0.0
        %351 = vmatpush1.msra.mxu0 0.0
        %352 = vmatprep.subr.mxu0 0.0
        %353 = vmatpush1.msra.mxu0 0.0
        %354 = vmatprep.subr.mxu0 0.0
        %355 = vmatpush1.msra.mxu0 0.0
        %356 = vmatprep.subr.mxu0 0.0
        %357 = vmatpush1.msra.mxu0 0.0
        %358 = vmatprep.subr.mxu0 0.0
        %359 = vmatpush1.msra.mxu0 0.0
        %360 = vmatprep.subr.mxu0 0.0
        %361 = vmatpush1.msra.mxu0 0.0
        %362 = vmatprep.subr.mxu0 0.0
        %363 = vmatpush1.msra.mxu0 0.0
        %364 = vmatprep.subr.mxu0 0.0
        %365 = vmatpush1.msra.mxu0 0.0
        %366 = vmatprep.subr.mxu0 0.0
        %367 = vmatpush1.msra.mxu0 0.0
        %368 = vmatprep.subr.mxu0 0.0
        %369 = vmatpush1.msra.mxu0 0.0
        %370 = vmatprep.subr.mxu0 0.0
        %371 = vmatpush1.msra.mxu0 0.0
        %372 = vmatprep.subr.mxu0 0.0
        %373 = vmatpush1.msra.mxu0 0.0
        %374 = vmatprep.subr.mxu0 0.0
        %375 = vmatpush1.msra.mxu0 0.0
        %376 = vmatprep.subr.mxu0 0.0
        %377 = vmatpush1.msra.mxu0 0.0
        %378 = vmatprep.subr.mxu0 0.0
        %379 = vmatpush1.msra.mxu0 0.0
        %380 = vmatprep.mubr.f32.mxu0 0.0
        %381 = vmatmul.mubr.f32.gmra.mrb[0].mxu0 %v314
        %v382 = vpop.f32.mrb[0].mxu0
        %v383 = vadd.f32 %v247, %v382
        %v384 = vpop.f32.mrb[0].mxu0
        %385 = vdwg.mxu0
        %v386 = vmax.f32 %v383, 0.0
        %vm387 = vcmask 31744
        %v389 = vsel %vm387, %v248, 0
        %v392 = vsel %vm387, %v249, 0
        %v395 = vsel %vm387, %v250, 0
        %v398 = vsel %vm387, %v251, 0
        %v401 = vsel %vm387, %v252, 0
        %v404 = vsel %vm387, %v253, 0
        %v407 = vsel %vm387, %v254, 0
        %v410 = vsel %vm387, %v255, 0
        %vm412 = vcmask 1043456
        %v414 = vsel %vm412, %v386, 0
        %416 = vmatprep.subr.mxu0 0.0
        %417 = vmatpush1.msra.mxu0 %v414
        %418 = vmatprep.subr.mxu0 0.0
        %419 = vmatpush1.msra.mxu0 0.0
        %420 = vmatprep.subr.mxu0 0.0
        %421 = vmatpush1.msra.mxu0 0.0
        %422 = vmatprep.subr.mxu0 0.0
        %423 = vmatpush1.msra.mxu0 0.0
        %424 = vmatprep.subr.mxu0 0.0
        %425 = vmatpush1.msra.mxu0 0.0
        %426 = vmatprep.subr.mxu0 0.0
        %427 = vmatpush1.msra.mxu0 0.0
        %428 = vmatprep.subr.mxu0 0.0
        %429 = vmatpush1.msra.mxu0 0.0
        %430 = vmatprep.subr.mxu0 0.0
        %431 = vmatpush1.msra.mxu0 0.0
        %432 = vmatprep.subr.mxu0 0.0
        %433 = vmatpush1.msra.mxu0 0.0
        %434 = vmatprep.subr.mxu0 0.0
        %435 = vmatpush1.msra.mxu0 0.0
        %436 = vmatprep.subr.mxu0 0.0
        %437 = vmatpush1.msra.mxu0 0.0
        %438 = vmatprep.subr.mxu0 0.0
        %439 = vmatpush1.msra.mxu0 0.0
        %440 = vmatprep.subr.mxu0 0.0
        %441 = vmatpush1.msra.mxu0 0.0
        %442 = vmatprep.subr.mxu0 0.0
        %443 = vmatpush1.msra.mxu0 0.0
        %444 = vmatprep.subr.mxu0 0.0
        %445 = vmatpush1.msra.mxu0 0.0
        %446 = vmatprep.subr.mxu0 0.0
        %447 = vmatpush1.msra.mxu0 0.0
        %448 = vmatprep.subr.mxu0 0.0
        %449 = vmatpush1.msra.mxu0 0.0
        %450 = vmatprep.subr.mxu0 0.0
        %451 = vmatpush1.msra.mxu0 0.0
        %452 = vmatprep.subr.mxu0 0.0
        %453 = vmatpush1.msra.mxu0 0.0
        %454 = vmatprep.subr.mxu0 0.0
        %455 = vmatpush1.msra.mxu0 0.0
        %456 = vmatprep.subr.mxu0 0.0
        %457 = vmatpush1.msra.mxu0 0.0
        %458 = vmatprep.subr.mxu0 0.0
        %459 = vmatpush1.msra.mxu0 0.0
        %460 = vmatprep.subr.mxu0 0.0
        %461 = vmatpush1.msra.mxu0 0.0
        %462 = vmatprep.subr.mxu0 0.0
        %463 = vmatpush1.msra.mxu0 0.0
        %464 = vmatprep.subr.mxu0 0.0
        %465 = vmatpush1.msra.mxu0 0.0
        %466 = vmatprep.subr.mxu0 0.0
        %467 = vmatpush1.msra.mxu0 0.0
        %468 = vmatprep.subr.mxu0 0.0
        %469 = vmatpush1.msra.mxu0 0.0
        %470 = vmatprep.subr.mxu0 0.0
        %471 = vmatpush1.msra.mxu0 0.0
        %472 = vmatprep.subr.mxu0 0.0
        %473 = vmatpush1.msra.mxu0 0.0
        %474 = vmatprep.subr.mxu0 0.0
        %475 = vmatpush1.msra.mxu0 0.0
        %476 = vmatprep.subr.mxu0 0.0
        %477 = vmatpush1.msra.mxu0 0.0
        %478 = vmatprep.subr.mxu0 0.0
        %479 = vmatpush1.msra.mxu0 0.0
        %480 = vmatprep.mubr.f32.mxu0 0.0
        %481 = vmatmul.mubr.f32.gmra.mrb[0].mxu0 %v389
        %v482 = vpop.f32.mrb[0].mxu0
        %v483 = vadd.f32 %v256, %v482
        %v484 = vpop.f32.mrb[0].mxu0
        %485 = vmatprep.mubr.f32.mxu0 0.0
        %486 = vmatmul.mubr.f32.gmra.mrb[0].mxu0 %v392
        %v487 = vpop.f32.mrb[0].mxu0
        %v488 = vadd.f32 %v257, %v487
        %v489 = vpop.f32.mrb[0].mxu0
        %490 = vmatprep.mubr.f32.mxu0 0.0
        %491 = vmatmul.mubr.f32.gmra.mrb[0].mxu0 %v395
        %v492 = vpop.f32.mrb[0].mxu0
        %v493 = vadd.f32 %v258, %v492
        %v494 = vpop.f32.mrb[0].mxu0
        %495 = vmatprep.mubr.f32.mxu0 0.0
        %496 = vmatmul.mubr.f32.gmra.mrb[0].mxu0 %v398
        %v497 = vpop.f32.mrb[0].mxu0
        %v498 = vadd.f32 %v259, %v497
        %v499 = vpop.f32.mrb[0].mxu0
        %500 = vmatprep.mubr.f32.mxu0 0.0
        %501 = vmatmul.mubr.f32.gmra.mrb[0].mxu0 %v401
        %v502 = vpop.f32.mrb[0].mxu0
        %v503 = vadd.f32 %v260, %v502
        %v504 = vpop.f32.mrb[0].mxu0
        %505 = vmatprep.mubr.f32.mxu0 0.0
        %506 = vmatmul.mubr.f32.gmra.mrb[0].mxu0 %v404
        %v507 = vpop.f32.mrb[0].mxu0
        %v508 = vadd.f32 %v261, %v507
        %v509 = vpop.f32.mrb[0].mxu0
        %510 = vmatprep.mubr.f32.mxu0 0.0
        %511 = vmatmul.mubr.f32.gmra.mrb[0].mxu0 %v407
        %v512 = vpop.f32.mrb[0].mxu0
        %v513 = vadd.f32 %v262, %v512
        %v514 = vpop.f32.mrb[0].mxu0
        %515 = vmatprep.mubr.f32.mxu0 0.0
        %516 = vmatmul.mubr.f32.gmra.mrb[0].mxu0 %v410
        %v517 = vpop.f32.mrb[0].mxu0
        %v518 = vadd.f32 %v263, %v517
        %v519 = vpop.f32.mrb[0].mxu0
        %520 = vdwg.mxu0
        %v521 = vxor.u32 %v483, 2147483648
        %v522 = vxor.u32 %v488, 2147483648
        %v523 = vxor.u32 %v493, 2147483648
        %v524 = vxor.u32 %v498, 2147483648
        %v525 = vxor.u32 %v503, 2147483648
        %v526 = vxor.u32 %v508, 2147483648
        %v527 = vxor.u32 %v513, 2147483648
        %v528 = vxor.u32 %v518, 2147483648
        %v529 = vmul.f32 %v521, 1.442695
        %v530 = vpow.pop %v529
        %v531 = vmul.f32 %v522, 1.442695
        %v532 = vpow.pop %v531
        %v533 = vmul.f32 %v523, 1.442695
        %v534 = vpow.pop %v533
        %v535 = vmul.f32 %v524, 1.442695
        %v536 = vpow.pop %v535
        %v537 = vmul.f32 %v525, 1.442695
        %v538 = vpow.pop %v537
        %v539 = vmul.f32 %v526, 1.442695
        %v540 = vpow.pop %v539
        %v541 = vmul.f32 %v527, 1.442695
        %v542 = vpow.pop %v541
        %v543 = vmul.f32 %v528, 1.442695
        %v544 = vpow.pop %v543
        %v545 = vadd.f32 %v530, 1.0
        %v546 = vadd.f32 %v532, 1.0
        %v547 = vadd.f32 %v534, 1.0
        %v548 = vadd.f32 %v536, 1.0
        %v549 = vadd.f32 %v538, 1.0
        %v550 = vadd.f32 %v540, 1.0
        %v551 = vadd.f32 %v542, 1.0
        %v552 = vadd.f32 %v544, 1.0
        %v553 = vrcp.pop %v545
        %v554 = vmul.f32 1.0, %v553
        %v555 = vrcp.pop %v546
        %v556 = vmul.f32 1.0, %v555
        %v557 = vrcp.pop %v547
        %v558 = vmul.f32 1.0, %v557
        %v559 = vrcp.pop %v548
        %v560 = vmul.f32 1.0, %v559
        %v561 = vrcp.pop %v549
        %v562 = vmul.f32 1.0, %v561
        %v563 = vrcp.pop %v550
        %v564 = vmul.f32 1.0, %v563
        %v565 = vrcp.pop %v551
        %v566 = vmul.f32 1.0, %v565
        %v567 = vrcp.pop %v552
        %v568 = vmul.f32 1.0, %v567
        %570 = vset.pattern.permute.xlu0 0
        %571 = vperm.xlu0 %570, %v554
        %v572 = vpop.permute.xlu0 %571
        %575 = vset.pattern.permute.xlu0 0
        %576 = vperm.xlu0 %575, %v556
        %v577 = vpop.permute.xlu0 %576
        %580 = vset.pattern.permute.xlu0 0
        %581 = vperm.xlu0 %580, %v558
        %v582 = vpop.permute.xlu0 %581
        %585 = vset.pattern.permute.xlu0 0
        %586 = vperm.xlu0 %585, %v560
        %v587 = vpop.permute.xlu0 %586
        %590 = vset.pattern.permute.xlu0 0
        %591 = vperm.xlu0 %590, %v562
        %v592 = vpop.permute.xlu0 %591
        %595 = vset.pattern.permute.xlu0 0
        %596 = vperm.xlu0 %595, %v564
        %v597 = vpop.permute.xlu0 %596
        %600 = vset.pattern.permute.xlu0 0
        %601 = vperm.xlu0 %600, %v566
        %v602 = vpop.permute.xlu0 %601
        %605 = vset.pattern.permute.xlu0 0
        %606 = vperm.xlu0 %605, %v568
        %v607 = vpop.permute.xlu0 %606
        %v609 = vmul.f32 %v264, %v572
        %v610 = vmul.f32 %v265, %v572
        %v611 = vmul.f32 %v266, %v577
        %v612 = vmul.f32 %v267, %v577
        %v613 = vmul.f32 %v268, %v582
        %v614 = vmul.f32 %v269, %v582
        %v615 = vmul.f32 %v270, %v587
        %v616 = vmul.f32 %v271, %v587
        %v617 = vmul.f32 %v272, %v592
        %v618 = vmul.f32 %v273, %v592
        %v619 = vmul.f32 %v274, %v597
        %v620 = vmul.f32 %v275, %v597
        %v621 = vmul.f32 %v276, %v602
        %v622 = vmul.f32 %v277, %v602
        %v623 = vmul.f32 %v278, %v607
        %v624 = vmul.f32 %v279, %v607
        %625 = vst [vmem:[%s243] sm:$0xff] %v609
        %626 = vst [vmem:[%s243 + $0x8] sm:$0xff] %v610
        %627 = vst [vmem:[%s243 + $0x10] sm:$0xff] %v611
        %628 = vst [vmem:[%s243 + $0x18] sm:$0xff] %v612
        %629 = vst [vmem:[%s243 + $0x20] sm:$0xff] %v613
        %630 = vst [vmem:[%s243 + $0x28] sm:$0xff] %v614
        %631 = vst [vmem:[%s243 + $0x30] sm:$0xff] %v615
        %632 = vst [vmem:[%s243 + $0x38] sm:$0xff] %v616
        %633 = vst [vmem:[%s243 + $0x40] sm:$0xff] %v617
        %634 = vst [vmem:[%s243 + $0x48] sm:$0xff] %v618
        %635 = vst [vmem:[%s243 + $0x50] sm:$0xff] %v619
        %636 = vst [vmem:[%s243 + $0x58] sm:$0xff] %v620
        %637 = vst [vmem:[%s243 + $0x60] sm:$0xff] %v621
        %638 = vst [vmem:[%s243 + $0x68] sm:$0xff] %v622
        %639 = vst [vmem:[%s243 + $0x70] sm:$0xff] %v623
        %640 = vst [vmem:[%s243 + $0x78] sm:$0xff] %v624
        %s641 = sand.u32 %s140, 1
        %s642 = scalar_lea.sflag [#allocation4], %s641
        %s643 = sand.u32 %s140, 1
        %s644 = smul.addr %s643, 128
        %s645 = scalar_lea.vmem [#allocation5], %s644
        // Predicated region
        $region45: #{tpu_custom_call.1} parent=39 // pred_check
          %p646 = pneg %p150
        $region46: #{tpu_custom_call.1} parent=39 // pred_check_branch
          %648 = sbr.rel (%p646) target = $region48
        $region47: #{tpu_custom_call.1} parent=39 // pred_region
          %s649 = smul.u32 8, %s22
          %s651 = ssub.s32 2048, 2048
          %652 = vsyncadd %s642, %s651
          %s653 = smul.addr %s649, 2
          %s654 = smul.addr %s653, 128
          %s655 = scalar_lea.hbm %s5, %s654
          %s656 = sshll.u32 %s645, 4
          %s657 = int_to_ptr.vmem [resolvable:$true] %s656
          %662 = dma.vmem_to_hbm [thread:$0]  %s657, 2048, %s655, %s642, 256, 256, 16
        $region48: #{tpu_custom_call.1} parent=39 // pred_fallthru
          _
      $region40: #{tpu_custom_call.1} parent=5 // pred_fallthru
        _
      %p663 = scmp.le.s32.totalorder 2, %s17
      // Predicated region
      $region49: #{tpu_custom_call.1} parent=5 // pred_check
        %p664 = pneg %p663
      $region50: #{tpu_custom_call.1} parent=5 // pred_check_branch
        %666 = sbr.rel (%p664) target = $region52
      $region51: #{tpu_custom_call.1} parent=5 // pred_region
        %s667 = ssub.s32 %s17, 2
        // Predicated region
        $region53: #{tpu_custom_call.1} parent=51 // pred_check
          %p668 = pneg %p156
        $region54: #{tpu_custom_call.1} parent=51 // pred_check_branch
          %670 = sbr.rel (%p668) target = $region56
        $region55: #{tpu_custom_call.1} parent=51 // pred_region
          %s671 = sand.u32 %s141, 1
          %s672 = scalar_lea.sflag [#allocation4], %s671
          %s673 = sand.u32 %s141, 1
          %s674 = smul.addr %s673, 128
          %s675 = scalar_lea.vmem [#allocation5], %s674
          %676 = dma.done %s672, 2048
        $region56: #{tpu_custom_call.1} parent=51 // pred_fallthru
          _
      $region52: #{tpu_custom_call.1} parent=5 // pred_fallthru
        _
    $region6: #{tpu_custom_call.1} parent=1 // loop_footer
      %s21 = sadd.s32 1, %s17
    $region7: #{tpu_custom_call.1} parent=1 // loop_footer_branch
      %16 = sbr.rel target = $region3
    $region8: #{tpu_custom_call.1} parent=1 // loop_exit
      _
    %677 = vsyncpa [#allocation3], 1
    %s678 = scalar_lea.sflag [#allocation3], 1
    %679 = vsyncpa %s678, 1
    %680 = vsyncpa [#allocation4], 1
    %s681 = scalar_lea.sflag [#allocation4], 1
    %682 = vsyncpa %s681, 1

</llo_original>
